<compile_context>
chip_gen: v7x
topology: tpu7x:2x2x1
jax: 0.10.0
libtpu: 0.0.40
codegen_flags: <defaults>
</compile_context>

<pallas_src>
import functools

import jax
import jax.numpy as jnp
from jax.experimental import pallas as pl
from jax.experimental.pallas import tpu as pltpu


def _r8(n):
    return (n + 7) // 8 * 8


def _r128(n):
    return (n + 127) // 128 * 128


# ----------------------------------------------------------------------------
# Packed parameter slab (single DMA, lane width >= 128).
# ----------------------------------------------------------------------------
def _param_offsets(C, Ci):
    off_w1 = 0                      # folded local conv1 weight  (Ci, C)
    off_wg1 = off_w1 + _r8(Ci)      # global conv1 weight        (Ci, C)
    off_w2 = off_wg1 + _r8(Ci)      # folded local conv2 weight  (C, Ci)
    off_wg2 = off_w2 + _r8(C)       # global conv2 weight        (C, Ci)
    off_vec = off_wg2 + _r8(C)      # per-channel vectors, 4 columns
    rows = off_vec + _r8(max(C, Ci))
    return off_w1, off_wg1, off_w2, off_wg2, off_vec, rows


def _pack_params(params, C, Ci, eps):
    (w1, b1, bn1_w, bn1_b, bn1_rm, bn1_rv,
     w2, b2, bn2_w, bn2_b, bn2_rm, bn2_rv,
     wg1, bg1, wg2, bg2) = params
    f32 = lambda a: jnp.asarray(a, jnp.float32).reshape(jnp.asarray(a).shape)

    # Fold eval-mode BatchNorm into the 1x1 convs:  BN(Wx + b) == W'x + c.
    s1 = f32(bn1_w) / jnp.sqrt(f32(bn1_rv) + eps)            # (Ci,)
    W1f = s1[:, None] * f32(w1)                               # (Ci, C)
    c1 = s1 * (f32(b1) - f32(bn1_rm)) + f32(bn1_b)            # (Ci,)
    s2 = f32(bn2_w) / jnp.sqrt(f32(bn2_rv) + eps)             # (C,)
    W2f = s2[:, None] * f32(w2)                               # (C, Ci)
    c2 = s2 * (f32(b2) - f32(bn2_rm)) + f32(bn2_b)            # (C,)

    off_w1, off_wg1, off_w2, off_wg2, off_vec, rows = _param_offsets(C, Ci)
    Cp = _r128(max(C, Ci, 4))                                 # lane-dense slab
    P = jnp.zeros((rows, Cp), jnp.float32)
    P = P.at[off_w1:off_w1 + Ci, :C].set(W1f)
    P = P.at[off_wg1:off_wg1 + Ci, :C].set(f32(wg1))
    P = P.at[off_w2:off_w2 + C, :Ci].set(W2f)
    P = P.at[off_wg2:off_wg2 + C, :Ci].set(f32(wg2))
    P = P.at[off_vec:off_vec + Ci, 0].set(c1.reshape(-1))
    P = P.at[off_vec:off_vec + Ci, 1].set(f32(bg1).reshape(-1))
    P = P.at[off_vec:off_vec + C, 2].set(c2.reshape(-1))
    P = P.at[off_vec:off_vec + C, 3].set(f32(bg2).reshape(-1))
    return P, rows, Cp


def _unpack(p_ref, C, Ci):
    off_w1, off_wg1, off_w2, off_wg2, off_vec, _ = _param_offsets(C, Ci)
    W1 = p_ref[off_w1:off_w1 + Ci, 0:C]           # (Ci, C)  conv1 (BN folded)
    Wg1 = p_ref[off_wg1:off_wg1 + Ci, 0:C]        # (Ci, C)  global conv1
    W2 = p_ref[off_w2:off_w2 + C, 0:Ci]           # (C, Ci)  conv2 (BN folded)
    Wg2 = p_ref[off_wg2:off_wg2 + C, 0:Ci]        # (C, Ci)  global conv2
    c1 = p_ref[off_vec:off_vec + Ci, 0:1]         # (Ci, 1)
    bg1 = p_ref[off_vec:off_vec + Ci, 1:2]        # (Ci, 1)
    c2 = p_ref[off_vec:off_vec + C, 2:3]          # (C, 1)
    bg2 = p_ref[off_vec:off_vec + C, 3:4]         # (C, 1)
    return W1, Wg1, W2, Wg2, c1, bg1, c2, bg2


# ----------------------------------------------------------------------------
# Shared in-kernel math.
# ----------------------------------------------------------------------------
def _local_branch(xa_f32, W1, W2, c1, c2):
    """conv1x1 -> BN (folded) -> ReLU -> conv1x1 -> BN (folded).  bf16 MXU
    operands, fp32 accumulation (perf feedback)."""
    h = jnp.dot(W1.astype(jnp.bfloat16), xa_f32.astype(jnp.bfloat16),
                preferred_element_type=jnp.float32) + c1          # (Ci, T)
    h = jnp.maximum(h, 0.0)
    xl = jnp.dot(W2.astype(jnp.bfloat16), h.astype(jnp.bfloat16),
                 preferred_element_type=jnp.float32) + c2         # (C, T)
    return xl


def _global_branch(g_mean, Wg1, Wg2, bg1, bg2):
    """1x1 -> ReLU -> 1x1 on the pooled (C, 1) vector (kept fp32; tiny)."""
    z = jnp.maximum(
        jnp.dot(Wg1, g_mean, preferred_element_type=jnp.float32) + bg1, 0.0)
    return jnp.dot(Wg2, z, preferred_element_type=jnp.float32) + bg2   # (C, 1)


# ----------------------------------------------------------------------------
# Kernel A: fully-resident fused kernel, Bt samples per grid step.
# ----------------------------------------------------------------------------
def _fused_kernel(xll_ref, xhl_ref, p_ref, out_ref, *, C, Ci, true_hw, Bt):
    W1, Wg1, W2, Wg2, c1, bg1, c2, bg2 = _unpack(p_ref, C, Ci)
    inv_hw = 1.0 / float(true_hw)
    for b in range(Bt):                      # static unroll; Bt is small
        xll = xll_ref[b].astype(jnp.float32)            # (C, HWp)
        xhl = xhl_ref[b].astype(jnp.float32)
        xa = xll + xhl
        xl = _local_branch(xa, W1, W2, c1, c2)          # (C, HWp)
        # Padded lanes are zero, so the sum is exact; divide by the true HW.
        g = jnp.sum(xa, axis=-1, keepdims=True) * inv_hw
        xg = _global_branch(g, Wg1, Wg2, bg1, bg2)      # (C, 1)
        wei = jax.nn.sigmoid(xl + xg)
        out_ref[b] = (xhl + (xll - xhl) * wei).astype(out_ref.dtype)


# ----------------------------------------------------------------------------
# Kernel B1 (tiled path, pass 1): global average pool + global attention.
# grid = (N, hw_tiles); hw axis last, "arbitrary" (accumulation).
# ----------------------------------------------------------------------------
def _pool_kernel(xll_ref, xhl_ref, p_ref, g_ref, acc_ref, *, C, Ci, true_hw):
    t = pl.program_id(1)

    @pl.when(t == 0)
    def _init():
        acc_ref[...] = jnp.zeros_like(acc_ref)

    xa = xll_ref[...].astype(jnp.float32) + xhl_ref[...].astype(jnp.float32)
    acc_ref[...] += jnp.sum(xa, axis=-1, keepdims=True)          # (C, 1)

    @pl.when(t == pl.num_programs(1) - 1)
    def _finalize():
        _, Wg1, _, Wg2, _, bg1, _, bg2 = _unpack(p_ref, C, Ci)
        g = acc_ref[...] * (1.0 / float(true_hw))
        g_ref[...] = _global_branch(g, Wg1, Wg2, bg1, bg2).astype(g_ref.dtype)


# ----------------------------------------------------------------------------
# Kernel B2 (tiled path, pass 2): local branch + fuse; no cross-tile deps, so
# both grid axes are "parallel" (v7x megacore-friendly).
# ----------------------------------------------------------------------------
def _apply_kernel(xll_ref, xhl_ref, g_ref, p_ref, out_ref, *, C, Ci):
    W1, _, W2, _, c1, _, c2, _ = _unpack(p_ref, C, Ci)
    xll = xll_ref[...].astype(jnp.float32)              # (C, T)
    xhl = xhl_ref[...].astype(jnp.float32)
    xa = xll + xhl
    xl = _local_branch(xa, W1, W2, c1, c2)              # (C, T)
    wei = jax.nn.sigmoid(xl + g_ref[...])               # (C,1) lane-broadcast
    out_ref[...] = (xhl + (xll - xhl) * wei).astype(out_ref.dtype)


# ----------------------------------------------------------------------------
# Wrapper.
# ----------------------------------------------------------------------------
def _vmem_budget_bytes():
    phys = None
    try:
        info = pltpu.get_tpu_info()
        phys = int(getattr(info, "vmem_capacity_bytes"))
    except Exception:
        phys = None
    if not phys or phys <= 0:
        phys = 64 << 20          # conservative default = v7x (64 MiB / TC)
    # ~40 MiB on v7x (64 MiB physical), ~96 MiB on v5e/v6e (128 MiB physical).
    budget = min((phys * 3) // 4, phys - (24 << 20))
    return max(budget, 24 << 20)


def dynamic_fuse(x_ll, x_hl, params, *, eps=1e-5, force_tiled=False, tile_hw=None):
    """DynamicFuse forward (eval-mode BatchNorm).  x_ll, x_hl: NCHW."""
    assert x_ll.shape == x_hl.shape and x_ll.ndim == 4
    N, C, H, W = x_ll.shape
    HW = H * W
    w1 = params[0]
    Ci = w1.shape[0]
    assert w1.shape == (Ci, C), (w1.shape, C)

    P, rows, Cp = _pack_params(params, C, Ci, eps)

    # NCHW -> (N, C, HW): free reshape, no transpose.
    xll = x_ll.reshape(N, C, HW)
    xhl = x_hl.reshape(N, C, HW)

    dsz = jnp.dtype(x_ll.dtype).itemsize
    budget = _vmem_budget_bytes()
    param_bytes = 2 * rows * Cp * 4

    def resident_est(bt, hwp):
        # 2 inputs + 1 output double-buffered (input dtype) + ~10 fp32 (C,HWp)
        # live temporaries + packed params + slack.
        return (6 * bt * dsz + 40 * min(bt, 2)) * C * hwp + param_bytes + (2 << 20)

    # ---- path selection (auto-switch to tiled instead of overflowing VMEM) ----
    HWp = _r128(HW)
    use_tiled = bool(force_tiled)
    Bt = 1
    if not use_tiled:
        divisors = [d for d in range(1, min(N, 8) + 1) if N % d == 0]
        fitting = [d for d in divisors if resident_est(d, HWp) <= budget]
        if not fitting:
            use_tiled = True
        else:
            Bt = max(fitting)    # fatten DMA blocks for small feature maps

    if use_tiled:
        per_lane = (6 * dsz + 40) * C        # bytes of working set per lane
        t_budget = min(budget, 16 << 20)
        T = max((t_budget // per_lane) // 128 * 128, 128)
        T = min(T, _r128(HW))
        if tile_hw is not None:
            T = max((int(tile_hw) // 128) * 128, 128)
        HWp = (HW + T - 1) // T * T

    # Zero-pad the lane axis for dense loads/stores; pooled-mean divisor stays
    # the true HW, and padded output lanes are sliced off below.
    if HWp != HW:
        xll = jnp.pad(xll, ((0, 0), (0, 0), (0, HWp - HW)))
        xhl = jnp.pad(xhl, ((0, 0), (0, 0), (0, HWp - HW)))

    out_dtype = x_ll.dtype

    if not use_tiled:
        grid = (N // Bt,)
        x_spec = pl.BlockSpec((Bt, C, HWp), lambda i: (i, 0, 0))
        p_spec = pl.BlockSpec((rows, Cp), lambda i: (0, 0))
        vmem_limit = int(min(max(resident_est(Bt, HWp), 16 << 20), budget))
        out = pl.pallas_call(
            functools.partial(_fused_kernel, C=C, Ci=Ci, true_hw=HW, Bt=Bt),
            out_shape=jax.ShapeDtypeStruct((N, C, HWp), out_dtype),
            grid=grid,
            in_specs=[x_spec, x_spec, p_spec],
            out_specs=x_spec,
            compiler_params=pltpu.CompilerParams(
                dimension_semantics=("parallel",),
                vmem_limit_bytes=vmem_limit),
        )(xll, xhl, P)
    else:
        n_t = HWp // T
        tile_est = (6 * dsz + 40) * C * T + param_bytes + (2 << 20)
        vmem_limit = int(min(max(tile_est, 16 << 20), budget))
        x_tile = pl.BlockSpec((None, C, T), lambda n, t: (n, 0, t))
        p_tile = pl.BlockSpec((rows, Cp), lambda n, t: (0, 0))
        g_spec = pl.BlockSpec((None, C, 1), lambda n, t: (n, 0, 0))

        # Pass 1: per-sample global average pool + global-attention logits.
        g = pl.pallas_call(
            functools.partial(_pool_kernel, C=C, Ci=Ci, true_hw=HW),
            out_shape=jax.ShapeDtypeStruct((N, C, 1), jnp.float32),
            grid=(N, n_t),
            in_specs=[x_tile, x_tile, p_tile],
            out_specs=g_spec,
            scratch_shapes=[pltpu.VMEM((C, 1), jnp.float32)],
            compiler_params=pltpu.CompilerParams(
                dimension_semantics=("parallel", "arbitrary"),
                vmem_limit_bytes=vmem_limit),
        )(xll, xhl, P)

        # Pass 2: local branch + fuse, fully parallel (N, hw_tile) grid.
        out = pl.pallas_call(
            functools.partial(_apply_kernel, C=C, Ci=Ci),
            out_shape=jax.ShapeDtypeStruct((N, C, HWp), out_dtype),
            grid=(N, n_t),
            in_specs=[x_tile, x_tile, g_spec, p_tile],
            out_specs=x_tile,
            compiler_params=pltpu.CompilerParams(
                dimension_semantics=("parallel", "parallel"),
                vmem_limit_bytes=vmem_limit),
        )(xll, xhl, g, P)

    if HWp != HW:
        out = out[:, :, :HW]
    return out.reshape(N, C, H, W)


# ----------------------------------------------------------------------------
# Pure-JAX reference: literal module forward with eval-mode BatchNorm2d.
# ----------------------------------------------------------------------------
def reference(x_ll, x_hl, params, eps=1e-5):
    (w1, b1, bn1_w, bn1_b, bn1_rm, bn1_rv,
     w2, b2, bn2_w, bn2_b, bn2_rm, bn2_rv,
     wg1, bg1, wg2, bg2) = params

    def bn(y, w, b, rm, rv):
        inv = (w / jnp.sqrt(rv + eps)).reshape(1, -1, 1, 1)
        return (y - rm.reshape(1, -1, 1, 1)) * inv + b.reshape(1, -1, 1, 1)

    xa = x_ll + x_hl
    h = jnp.einsum('oc,nchw->nohw', w1, xa) + b1.reshape(1, -1, 1, 1)
    h = bn(h, bn1_w, bn1_b, bn1_rm, bn1_rv)
    h = jnp.maximum(h, 0.0)
    h = jnp.einsum('oc,nchw->nohw', w2, h) + b2.reshape(1, -1, 1, 1)
    xl = bn(h, bn2_w, bn2_b, bn2_rm, bn2_rv)

    g = xa.mean(axis=(2, 3))                                        # (N, C)
    g = jnp.maximum(jnp.einsum('oc,nc->no', wg1, g) + bg1.reshape(1, -1), 0.0)
    xg = (jnp.einsum('oc,nc->no', wg2, g) + bg2.reshape(1, -1))[:, :, None, None]

    wei = jax.nn.sigmoid(xl + xg)
    return x_ll * wei + x_hl * (1.0 - wei)


if __name__ == "__main__":
    def make_case(key, N, C, H, W, reduction=4):
        Ci = max(C // reduction, 1)
        ks = jax.random.split(key, 18)
        x_ll = jax.random.normal(ks[0], (N, C, H, W), jnp.float32)
        x_hl = jax.random.normal(ks[1], (N, C, H, W), jnp.float32)
        w1 = 0.2 * jax.random.normal(ks[2], (Ci, C), jnp.float32)
        b1 = 0.1 * jax.random.normal(ks[3], (Ci,), jnp.float32)
        bn1_w = 1.0 + 0.1 * jax.random.normal(ks[4], (Ci,), jnp.float32)
        bn1_b = 0.1 * jax.random.normal(ks[5], (Ci,), jnp.float32)
        bn1_rm = 0.1 * jax.random.normal(ks[6], (Ci,), jnp.float32)
        bn1_rv = 0.5 + jax.random.uniform(ks[7], (Ci,), jnp.float32)
        w2 = 0.2 * jax.random.normal(ks[8], (C, Ci), jnp.float32)
        b2 = 0.1 * jax.random.normal(ks[9], (C,), jnp.float32)
        bn2_w = 1.0 + 0.1 * jax.random.normal(ks[10], (C,), jnp.float32)
        bn2_b = 0.1 * jax.random.normal(ks[11], (C,), jnp.float32)
        bn2_rm = 0.1 * jax.random.normal(ks[12], (C,), jnp.float32)
        bn2_rv = 0.5 + jax.random.uniform(ks[13], (C,), jnp.float32)
        wg1 = 0.2 * jax.random.normal(ks[14], (Ci, C), jnp.float32)
        bg1 = 0.1 * jax.random.normal(ks[15], (Ci,), jnp.float32)
        wg2 = 0.2 * jax.random.normal(ks[16], (C, Ci), jnp.float32)
        bg2 = 0.1 * jax.random.normal(ks[17], (C,), jnp.float32)
        params = (w1, b1, bn1_w, bn1_b, bn1_rm, bn1_rv,
                  w2, b2, bn2_w, bn2_b, bn2_rm, bn2_rv,
                  wg1, bg1, wg2, bg2)
        return x_ll, x_hl, params

    def run_case(x_ll, x_hl, params, **kw):
        out = jax.block_until_ready(dynamic_fuse(x_ll, x_hl, params, **kw))
        ref = jax.block_until_ready(reference(x_ll, x_hl, params))
        assert out.shape == x_ll.shape, (out.shape, x_ll.shape)
        err = float(jnp.max(jnp.abs(out - ref)))
        # Tolerance sized for the bf16 MXU operands requested by the review
        # (two chained bf16 matmuls on O(1) activations, fp32 accumulation).
        assert jnp.allclose(out, ref, rtol=3e-2, atol=3e-2), err
        return err

    key = jax.random.PRNGKey(0)
    k1, k2 = jax.random.split(key)

    # Case 1: channels=16, reduction=4 -> inter=4; H*W=256 (already lane-dense).
    x_ll, x_hl, params = make_case(k1, 2, 16, 16, 16)
    run_case(x_ll, x_hl, params)                                  # resident, Bt=2
    run_case(x_ll, x_hl, params, force_tiled=True, tile_hw=128)   # tiled, 2 hw tiles

    # Case 2: H*W=144 (not a multiple of 128) -> exercises lane padding.
    x_ll2, x_hl2, params2 = make_case(k2, 1, 32, 12, 12)
    run_case(x_ll2, x_hl2, params2)                               # resident + pad
    run_case(x_ll2, x_hl2, params2, force_tiled=True, tile_hw=128)  # tiled + pad

    print("KERNEL_OK")
</pallas_src>

<mosaic_0001>
module attributes {stable_mosaic.version = 11 : i64} {
  func.func @_fused_kernel(%arg0: i32, %arg1: memref<2x16x256xf32, #tpu.memory_space<vmem>>, %arg2: memref<2x16x256xf32, #tpu.memory_space<vmem>>, %arg3: memref<64x128xf32, #tpu.memory_space<vmem>>, %arg4: memref<2x16x256xf32, #tpu.memory_space<vmem>>) attributes {dimension_semantics = [#tpu.dimension_semantics<parallel>], iteration_bounds = array<i64: 1>, scalar_prefetch = 0 : i64, scratch_operands = 0 : i64, tpu.core_type = #tpu.core_type<tc>, window_params = [{transform_indices = @transform_0, window_bounds = array<i64: 2, 16, 256>}, {transform_indices = @transform_1, window_bounds = array<i64: 2, 16, 256>}, {pipeline_mode = #tpu.pipeline_mode<synchronous>, transform_indices = @transform_2, window_bounds = array<i64: 64, 128>}, {transform_indices = @transform_3, window_bounds = array<i64: 2, 16, 256>}]} {
    %c0 = arith.constant 0 : index
    %c0_0 = arith.constant 0 : index
    %0 = vector.load %arg3[%c0, %c0_0] : memref<64x128xf32, #tpu.memory_space<vmem>>, vector<4x16xf32>
    %c8 = arith.constant 8 : index
    %c0_1 = arith.constant 0 : index
    %1 = vector.load %arg3[%c8, %c0_1] : memref<64x128xf32, #tpu.memory_space<vmem>>, vector<4x16xf32>
    %c16 = arith.constant 16 : index
    %c0_2 = arith.constant 0 : index
    %2 = vector.load %arg3[%c16, %c0_2] : memref<64x128xf32, #tpu.memory_space<vmem>>, vector<16x4xf32>
    %c32 = arith.constant 32 : index
    %c0_3 = arith.constant 0 : index
    %3 = vector.load %arg3[%c32, %c0_3] : memref<64x128xf32, #tpu.memory_space<vmem>>, vector<16x4xf32>
    %c48 = arith.constant 48 : index
    %c0_4 = arith.constant 0 : index
    %4 = vector.load %arg3[%c48, %c0_4] : memref<64x128xf32, #tpu.memory_space<vmem>>, vector<4x1xf32>
    %c48_5 = arith.constant 48 : index
    %c1 = arith.constant 1 : index
    %5 = vector.load %arg3[%c48_5, %c1] : memref<64x128xf32, #tpu.memory_space<vmem>>, vector<4x1xf32>
    %c48_6 = arith.constant 48 : index
    %c2 = arith.constant 2 : index
    %6 = vector.load %arg3[%c48_6, %c2] : memref<64x128xf32, #tpu.memory_space<vmem>>, vector<16x1xf32>
    %c48_7 = arith.constant 48 : index
    %c3 = arith.constant 3 : index
    %7 = vector.load %arg3[%c48_7, %c3] : memref<64x128xf32, #tpu.memory_space<vmem>>, vector<16x1xf32>
    %c0_8 = arith.constant 0 : index
    %c0_9 = arith.constant 0 : index
    %c0_10 = arith.constant 0 : index
    %8 = vector.load %arg1[%c0_8, %c0_9, %c0_10] : memref<2x16x256xf32, #tpu.memory_space<vmem>>, vector<1x16x256xf32>
    %9 = vector.shape_cast %8 : vector<1x16x256xf32> to vector<16x256xf32>
    %c0_11 = arith.constant 0 : index
    %c0_12 = arith.constant 0 : index
    %c0_13 = arith.constant 0 : index
    %10 = vector.load %arg2[%c0_11, %c0_12, %c0_13] : memref<2x16x256xf32, #tpu.memory_space<vmem>>, vector<1x16x256xf32>
    %11 = vector.shape_cast %10 : vector<1x16x256xf32> to vector<16x256xf32>
    %12 = arith.addf %9, %11 : vector<16x256xf32>
    %13 = arith.truncf %0 : vector<4x16xf32> to vector<4x16xbf16>
    %14 = arith.truncf %12 : vector<16x256xf32> to vector<16x256xbf16>
    %cst = arith.constant dense<0.000000e+00> : vector<4x256xf32>
    %15 = tpu.matmul %13, %14, %cst {dimension_numbers = #tpu.dot_dimension_numbers<[1], [0], [0], [1], [0, 0, 1, 1], [], []>} : vector<4x16xbf16>, vector<16x256xbf16>, vector<4x256xf32> -> vector<4x256xf32>
    %16 = vector.broadcast %4 : vector<4x1xf32> to vector<4x256xf32>
    %17 = arith.addf %15, %16 : vector<4x256xf32>
    %cst_14 = arith.constant 0.000000e+00 : f32
    %18 = vector.broadcast %cst_14 : f32 to vector<4x256xf32>
    %19 = arith.maximumf %17, %18 : vector<4x256xf32>
    %20 = arith.truncf %2 : vector<16x4xf32> to vector<16x4xbf16>
    %21 = arith.truncf %19 : vector<4x256xf32> to vector<4x256xbf16>
    %cst_15 = arith.constant dense<0.000000e+00> : vector<16x256xf32>
    %22 = tpu.matmul %20, %21, %cst_15 {dimension_numbers = #tpu.dot_dimension_numbers<[1], [0], [0], [1], [0, 0, 1, 1], [], []>} : vector<16x4xbf16>, vector<4x256xbf16>, vector<16x256xf32> -> vector<16x256xf32>
    %23 = vector.broadcast %6 : vector<16x1xf32> to vector<16x256xf32>
    %24 = arith.addf %22, %23 : vector<16x256xf32>
    %cst_16 = arith.constant dense<0.000000e+00> : vector<16xf32>
    %25 = vector.multi_reduction <add>, %12, %cst_16 [1] : vector<16x256xf32> to vector<16xf32>
    %26 = vector.shape_cast %25 : vector<16xf32> to vector<16x1xf32>
    %cst_17 = arith.constant 3.906250e-03 : f32
    %27 = vector.broadcast %cst_17 : f32 to vector<16x1xf32>
    %28 = arith.mulf %26, %27 : vector<16x1xf32>
    %cst_18 = arith.constant dense<0.000000e+00> : vector<4x1xf32>
    %29 = tpu.matmul %1, %28, %cst_18 {dimension_numbers = #tpu.dot_dimension_numbers<[1], [0], [0], [1], [0, 0, 1, 1], [], []>} : vector<4x16xf32>, vector<16x1xf32>, vector<4x1xf32> -> vector<4x1xf32>
    %30 = arith.addf %29, %5 : vector<4x1xf32>
    %cst_19 = arith.constant 0.000000e+00 : f32
    %31 = vector.broadcast %cst_19 : f32 to vector<4x1xf32>
    %32 = arith.maximumf %30, %31 : vector<4x1xf32>
    %cst_20 = arith.constant dense<0.000000e+00> : vector<16x1xf32>
    %33 = tpu.matmul %3, %32, %cst_20 {dimension_numbers = #tpu.dot_dimension_numbers<[1], [0], [0], [1], [0, 0, 1, 1], [], []>} : vector<16x4xf32>, vector<4x1xf32>, vector<16x1xf32> -> vector<16x1xf32>
    %34 = arith.addf %33, %7 : vector<16x1xf32>
    %35 = vector.broadcast %34 : vector<16x1xf32> to vector<16x256xf32>
    %36 = arith.addf %24, %35 : vector<16x256xf32>
    %37 = arith.negf %36 : vector<16x256xf32>
    %38 = math.exp %37 : vector<16x256xf32>
    %cst_21 = arith.constant 1.000000e+00 : f32
    %39 = vector.broadcast %cst_21 : f32 to vector<16x256xf32>
    %40 = arith.addf %39, %38 : vector<16x256xf32>
    %41 = arith.divf %39, %40 : vector<16x256xf32>
    %42 = arith.subf %9, %11 : vector<16x256xf32>
    %43 = arith.mulf %42, %41 : vector<16x256xf32>
    %44 = arith.addf %11, %43 : vector<16x256xf32>
    %c0_22 = arith.constant 0 : index
    %c0_23 = arith.constant 0 : index
    %c0_24 = arith.constant 0 : index
    %45 = vector.load %arg4[%c0_22, %c0_23, %c0_24] : memref<2x16x256xf32, #tpu.memory_space<vmem>>, vector<1x16x256xf32>
    %46 = vector.shape_cast %45 : vector<1x16x256xf32> to vector<16x256xf32>
    %47 = vector.shape_cast %44 : vector<16x256xf32> to vector<1x16x256xf32>
    tpu.vector_store %arg4[%c0_22, %c0_23, %c0_24], %47 {strides = array<i32>} : memref<2x16x256xf32, #tpu.memory_space<vmem>>, vector<1x16x256xf32>,
    %c1_25 = arith.constant 1 : index
    %c0_26 = arith.constant 0 : index
    %c0_27 = arith.constant 0 : index
    %48 = vector.load %arg1[%c1_25, %c0_26, %c0_27] : memref<2x16x256xf32, #tpu.memory_space<vmem>>, vector<1x16x256xf32>
    %49 = vector.shape_cast %48 : vector<1x16x256xf32> to vector<16x256xf32>
    %c1_28 = arith.constant 1 : index
    %c0_29 = arith.constant 0 : index
    %c0_30 = arith.constant 0 : index
    %50 = vector.load %arg2[%c1_28, %c0_29, %c0_30] : memref<2x16x256xf32, #tpu.memory_space<vmem>>, vector<1x16x256xf32>
    %51 = vector.shape_cast %50 : vector<1x16x256xf32> to vector<16x256xf32>
    %52 = arith.addf %49, %51 : vector<16x256xf32>
    %53 = arith.truncf %0 : vector<4x16xf32> to vector<4x16xbf16>
    %54 = arith.truncf %52 : vector<16x256xf32> to vector<16x256xbf16>
    %cst_31 = arith.constant dense<0.000000e+00> : vector<4x256xf32>
    %55 = tpu.matmul %53, %54, %cst_31 {dimension_numbers = #tpu.dot_dimension_numbers<[1], [0], [0], [1], [0, 0, 1, 1], [], []>} : vector<4x16xbf16>, vector<16x256xbf16>, vector<4x256xf32> -> vector<4x256xf32>
    %56 = vector.broadcast %4 : vector<4x1xf32> to vector<4x256xf32>
    %57 = arith.addf %55, %56 : vector<4x256xf32>
    %cst_32 = arith.constant 0.000000e+00 : f32
    %58 = vector.broadcast %cst_32 : f32 to vector<4x256xf32>
    %59 = arith.maximumf %57, %58 : vector<4x256xf32>
    %60 = arith.truncf %2 : vector<16x4xf32> to vector<16x4xbf16>
    %61 = arith.truncf %59 : vector<4x256xf32> to vector<4x256xbf16>
    %cst_33 = arith.constant dense<0.000000e+00> : vector<16x256xf32>
    %62 = tpu.matmul %60, %61, %cst_33 {dimension_numbers = #tpu.dot_dimension_numbers<[1], [0], [0], [1], [0, 0, 1, 1], [], []>} : vector<16x4xbf16>, vector<4x256xbf16>, vector<16x256xf32> -> vector<16x256xf32>
    %63 = vector.broadcast %6 : vector<16x1xf32> to vector<16x256xf32>
    %64 = arith.addf %62, %63 : vector<16x256xf32>
    %cst_34 = arith.constant dense<0.000000e+00> : vector<16xf32>
    %65 = vector.multi_reduction <add>, %52, %cst_34 [1] : vector<16x256xf32> to vector<16xf32>
    %66 = vector.shape_cast %65 : vector<16xf32> to vector<16x1xf32>
    %cst_35 = arith.constant 3.906250e-03 : f32
    %67 = vector.broadcast %cst_35 : f32 to vector<16x1xf32>
    %68 = arith.mulf %66, %67 : vector<16x1xf32>
    %cst_36 = arith.constant dense<0.000000e+00> : vector<4x1xf32>
    %69 = tpu.matmul %1, %68, %cst_36 {dimension_numbers = #tpu.dot_dimension_numbers<[1], [0], [0], [1], [0, 0, 1, 1], [], []>} : vector<4x16xf32>, vector<16x1xf32>, vector<4x1xf32> -> vector<4x1xf32>
    %70 = arith.addf %69, %5 : vector<4x1xf32>
    %cst_37 = arith.constant 0.000000e+00 : f32
    %71 = vector.broadcast %cst_37 : f32 to vector<4x1xf32>
    %72 = arith.maximumf %70, %71 : vector<4x1xf32>
    %cst_38 = arith.constant dense<0.000000e+00> : vector<16x1xf32>
    %73 = tpu.matmul %3, %72, %cst_38 {dimension_numbers = #tpu.dot_dimension_numbers<[1], [0], [0], [1], [0, 0, 1, 1], [], []>} : vector<16x4xf32>, vector<4x1xf32>, vector<16x1xf32> -> vector<16x1xf32>
    %74 = arith.addf %73, %7 : vector<16x1xf32>
    %75 = vector.broadcast %74 : vector<16x1xf32> to vector<16x256xf32>
    %76 = arith.addf %64, %75 : vector<16x256xf32>
    %77 = arith.negf %76 : vector<16x256xf32>
    %78 = math.exp %77 : vector<16x256xf32>
    %cst_39 = arith.constant 1.000000e+00 : f32
    %79 = vector.broadcast %cst_39 : f32 to vector<16x256xf32>
    %80 = arith.addf %79, %78 : vector<16x256xf32>
    %81 = arith.divf %79, %80 : vector<16x256xf32>
    %82 = arith.subf %49, %51 : vector<16x256xf32>
    %83 = arith.mulf %82, %81 : vector<16x256xf32>
    %84 = arith.addf %51, %83 : vector<16x256xf32>
    %c1_40 = arith.constant 1 : index
    %c0_41 = arith.constant 0 : index
    %c0_42 = arith.constant 0 : index
    %85 = vector.load %arg4[%c1_40, %c0_41, %c0_42] : memref<2x16x256xf32, #tpu.memory_space<vmem>>, vector<1x16x256xf32>
    %86 = vector.shape_cast %85 : vector<1x16x256xf32> to vector<16x256xf32>
    %87 = vector.shape_cast %84 : vector<16x256xf32> to vector<1x16x256xf32>
    tpu.vector_store %arg4[%c1_40, %c0_41, %c0_42], %87 {strides = array<i32>} : memref<2x16x256xf32, #tpu.memory_space<vmem>>, vector<1x16x256xf32>,
    return
  }
  func.func @transform_0(%arg0: i32) -> (i32, i32, i32) {
    %c0_i32 = arith.constant 0 : i32
    %c0_i32_0 = arith.constant 0 : i32
    %c0_i32_1 = arith.constant 0 : i32
    return %arg0, %c0_i32, %c0_i32_0 : i32, i32, i32
  }
  func.func @transform_1(%arg0: i32) -> (i32, i32, i32) {
    %c0_i32 = arith.constant 0 : i32
    %c0_i32_0 = arith.constant 0 : i32
    %c0_i32_1 = arith.constant 0 : i32
    return %arg0, %c0_i32, %c0_i32_0 : i32, i32, i32
  }
  func.func @transform_2(%arg0: i32) -> (i32, i32) {
    %c0_i32 = arith.constant 0 : i32
    %c0_i32_0 = arith.constant 0 : i32
    %c0_i32_1 = arith.constant 0 : i32
    return %c0_i32, %c0_i32_0 : i32, i32
  }
  func.func @transform_3(%arg0: i32) -> (i32, i32, i32) {
    %c0_i32 = arith.constant 0 : i32
    %c0_i32_0 = arith.constant 0 : i32
    %c0_i32_1 = arith.constant 0 : i32
    return %arg0, %c0_i32, %c0_i32_0 : i32, i32, i32
  }
}

</mosaic_0001>

<llo_original>
// kernel: tpu_custom_call.1
$region0: #{tpu_custom_call.1}
  #allocation0 [shape = 'u32[]', space=smem, size = 0x4, offset = 0x4, fixed_abs, tag = 'smem constant byte address 0x4 - core index']
  #allocation1 [shape = 'u32[144,128]{1,0:T(1,128)}', space=vmem, size = 0x12000, scoped, tag = 'internal scratch']
  %s0 = inlined_call_operand.hbm [shape: f32[2,16,256], index: 0, kind: input, shape index: {}]
  %s1 = inlined_call_operand.hbm [shape: f32[2,16,256], index: 1, kind: input, shape index: {}]
  %s2 = inlined_call_operand.hbm [shape: f32[64,128], index: 2, kind: input, shape index: {}]
  %s3 = inlined_call_operand.hbm [shape: f32[2,16,256], index: 3, kind: output, shape index: {}]
  %s4 = sld [smem:[#allocation0]]
  $region34: #{tpu_custom_call.1} parent=0
    _
  %s6 = ssub.s32 1, %s4
  %s7 = scalar_select 0, %s6, %s4
  $region1: #{tpu_custom_call.1} parent=0
    #allocation2 [shape = 'u8[32768]{0}', space=vmem, size = 0x8000, scoped, tag = 'input window, operand 0, single buffered']
    #allocation3 [shape = 's32[1]{0}', space=sflag, size = 0x4, scoped, tag = 'scoped memory for tpu_custom_call.1']
    #allocation4 [shape = 's32[1]{0}', space=sflag, size = 0x4, scoped, tag = 'scoped memory for tpu_custom_call.1']
    #allocation5 [shape = 'u8[32768]{0}', space=vmem, size = 0x8000, scoped, tag = 'input window, operand 1, single buffered']
    #allocation6 [shape = 's32[1]{0}', space=sflag, size = 0x4, scoped, tag = 'scoped memory for tpu_custom_call.1']
    #allocation7 [shape = 'u8[32768]{0}', space=vmem, size = 0x8000, scoped, tag = 'input window, operand 2, single buffered']
    #allocation8 [shape = 'u8[32768]{0}', space=vmem, size = 0x8000, scoped, tag = 'output window, operand 0, single buffered']
    %8 = vsyncpa [#allocation3], 0
    %9 = vsyncpa [#allocation6], 0
    %10 = vsyncpa [#allocation4], 0
    // Predicated region
    $region2: #{tpu_custom_call.1} parent=1 // pred_check
      _
    $region3: #{tpu_custom_call.1} parent=1 // pred_check_branch
      %12 = sbr.rel (0) target = $region5
    $region4: #{tpu_custom_call.1} parent=1 // pred_region
      %s14 = ssub.s32 1024, 1024
      %15 = vsyncadd [#allocation3], %s14
      %s16 = sshll.u32 [#allocation2], 4
      %s17 = int_to_ptr.vmem [resolvable:$true] %s16
      %22 = dma.hbm_to_vmem [thread:$0]  %s0, 1024, %s17, [#allocation3], 256, 256, 16
    $region5: #{tpu_custom_call.1} parent=1 // pred_fallthru
      _
    // Predicated region
    $region6: #{tpu_custom_call.1} parent=1 // pred_check
      _
    $region7: #{tpu_custom_call.1} parent=1 // pred_check_branch
      %24 = sbr.rel (0) target = $region9
    $region8: #{tpu_custom_call.1} parent=1 // pred_region
      %s26 = ssub.s32 1024, 1024
      %27 = vsyncadd [#allocation6], %s26
      %s28 = sshll.u32 [#allocation5], 4
      %s29 = int_to_ptr.vmem [resolvable:$true] %s28
      %34 = dma.hbm_to_vmem [thread:$0]  %s1, 1024, %s29, [#allocation6], 256, 256, 16
    $region9: #{tpu_custom_call.1} parent=1 // pred_fallthru
      _
    // Predicated region
    $region10: #{tpu_custom_call.1} parent=1 // pred_check
      _
    $region11: #{tpu_custom_call.1} parent=1 // pred_check_branch
      %36 = sbr.rel (0) target = $region13
    $region12: #{tpu_custom_call.1} parent=1 // pred_region
      %s38 = ssub.s32 1024, 1024
      %39 = vsyncadd [#allocation6], %s38
      %s40 = sshll.u32 [#allocation7], 4
      %s41 = int_to_ptr.vmem [resolvable:$true] %s40
      %46 = dma.hbm_to_vmem [thread:$0]  %s2, 1024, %s41, [#allocation6], 128, 128, 8
    $region13: #{tpu_custom_call.1} parent=1 // pred_fallthru
      _
    // Predicated region
    $region14: #{tpu_custom_call.1} parent=1 // pred_check
      _
    $region15: #{tpu_custom_call.1} parent=1 // pred_check_branch
      %48 = sbr.rel (0) target = $region17
    $region16: #{tpu_custom_call.1} parent=1 // pred_region
      %49 = dma.done [#allocation3], 1024
    $region17: #{tpu_custom_call.1} parent=1 // pred_fallthru
      _
    // Predicated region
    $region18: #{tpu_custom_call.1} parent=1 // pred_check
      _
    $region19: #{tpu_custom_call.1} parent=1 // pred_check_branch
      %51 = sbr.rel (0) target = $region21
    $region20: #{tpu_custom_call.1} parent=1 // pred_region
      %52 = dma.done [#allocation6], 1024
    $region21: #{tpu_custom_call.1} parent=1 // pred_fallthru
      _
    // Predicated region
    $region22: #{tpu_custom_call.1} parent=1 // pred_check
      _
    $region23: #{tpu_custom_call.1} parent=1 // pred_check_branch
      %54 = sbr.rel (0) target = $region25
    $region24: #{tpu_custom_call.1} parent=1 // pred_region
      %55 = dma.done [#allocation6], 1024
    $region25: #{tpu_custom_call.1} parent=1 // pred_fallthru
      _
    %v57 = vld [vmem:[#allocation7] sm:$0xf]
    %v58 = vld [vmem:[#allocation7 + $0x8] sm:$0xf]
    %v59 = vld [vmem:[#allocation7 + $0x10] sm:$0xff]
    %v60 = vld [vmem:[#allocation7 + $0x18] sm:$0xff]
    %v61 = vld [vmem:[#allocation7 + $0x20] sm:$0xff]
    %v62 = vld [vmem:[#allocation7 + $0x28] sm:$0xff]
    %v63 = vld [vmem:[#allocation7 + $0x30] sm:$0xf]
    %v64 = vld [vmem:[#allocation7 + $0x30] sm:$0xff]
    %v65 = vld [vmem:[#allocation7 + $0x38] sm:$0xff]
    %v66 = vld [vmem:[#allocation2] sm:$0xff]
    %v67 = vld [vmem:[#allocation2 + $0x8] sm:$0xff]
    %v68 = vld [vmem:[#allocation2 + $0x10] sm:$0xff]
    %v69 = vld [vmem:[#allocation2 + $0x18] sm:$0xff]
    %v70 = vld [vmem:[#allocation5] sm:$0xff]
    %v71 = vld [vmem:[#allocation5 + $0x8] sm:$0xff]
    %v72 = vld [vmem:[#allocation5 + $0x10] sm:$0xff]
    %v73 = vld [vmem:[#allocation5 + $0x18] sm:$0xff]
    %v74 = vadd.f32 %v66, %v70
    %v75 = vadd.f32 %v67, %v71
    %v76 = vadd.f32 %v68, %v72
    %v77 = vadd.f32 %v69, %v73
    %v78 = vpack.c.bf16 %v57, %v57
    %v79 = vpack.c.bf16 %v76, %v74
    %v80 = vpack.c.bf16 %v77, %v75
    %82 = vset.pattern.permute.xlu0 0
    %83 = vperm.xlu0 %82, %v63
    %v84 = vpop.permute.xlu0 %83
    %vm86 = vcmask 130048
    %v88 = vsel %vm86, %v78, 0
    %90 = vmatprep.subr.bf16.mxu0 %v80
    %91 = vmatpush1.bf16.msra.mxu0 %v79
    %92 = vmatprep.subr.bf16.mxu0 0
    %93 = vmatpush1.bf16.msra.mxu0 0
    %94 = vmatprep.subr.bf16.mxu0 0
    %95 = vmatpush1.bf16.msra.mxu0 0
    %96 = vmatprep.subr.bf16.mxu0 0
    %97 = vmatpush1.bf16.msra.mxu0 0
    %98 = vmatprep.subr.bf16.mxu0 0
    %99 = vmatpush1.bf16.msra.mxu0 0
    %100 = vmatprep.subr.bf16.mxu0 0
    %101 = vmatpush1.bf16.msra.mxu0 0
    %102 = vmatprep.subr.bf16.mxu0 0
    %103 = vmatpush1.bf16.msra.mxu0 0
    %104 = vmatprep.subr.bf16.mxu0 0
    %105 = vmatpush1.bf16.msra.mxu0 0
    %106 = vmatprep.subr.bf16.mxu0 0
    %107 = vmatpush1.bf16.msra.mxu0 0
    %108 = vmatprep.subr.bf16.mxu0 0
    %109 = vmatpush1.bf16.msra.mxu0 0
    %110 = vmatprep.subr.bf16.mxu0 0
    %111 = vmatpush1.bf16.msra.mxu0 0
    %112 = vmatprep.subr.bf16.mxu0 0
    %113 = vmatpush1.bf16.msra.mxu0 0
    %114 = vmatprep.subr.bf16.mxu0 0
    %115 = vmatpush1.bf16.msra.mxu0 0
    %116 = vmatprep.subr.bf16.mxu0 0
    %117 = vmatpush1.bf16.msra.mxu0 0
    %118 = vmatprep.subr.bf16.mxu0 0
    %119 = vmatpush1.bf16.msra.mxu0 0
    %120 = vmatprep.subr.bf16.mxu0 0
    %121 = vmatpush1.bf16.msra.mxu0 0
    %122 = vmatprep.mubr.bf16.mxu0 0
    %123 = vmatmul.mubr.bf16.gmra.mrb[0].mxu0 %v88
    %v124 = vpop.f32.mrb[0].mxu0
    %v125 = vadd.f32 %v84, %v124
    %v126 = vpop.f32.mrb[0].mxu0
    %v127 = vadd.f32 %v84, %v126
    %v128 = vpop.f32.mrb[0].mxu0
    %v129 = vpop.f32.mrb[0].mxu0
    %130 = vdwg.mxu0
    %v131 = vmax.f32 %v125, 0.0
    %v132 = vmax.f32 %v127, 0.0
    %v133 = vpack.c.bf16 %v60, %v59
    %v134 = vpack.c.bf16 %v131, %v131
    %v135 = vpack.c.bf16 %v132, %v132
    %137 = vset.pattern.permute.xlu0 2
    %138 = vperm.xlu0 %137, %v64
    %v139 = vpop.permute.xlu0 %138
    %142 = vset.pattern.permute.xlu0 2
    %143 = vperm.xlu0 %142, %v65
    %v144 = vpop.permute.xlu0 %143
    %vm146 = vcmask 31744
    %v148 = vsel %vm146, %v133, 0
    %vm150 = vcmask 1041408
    %v152 = vsel %vm150, %v134, 0
    %v155 = vsel %vm150, %v135, 0
    %157 = vmatprep.subr.bf16.mxu0 %v155
    %158 = vmatpush1.bf16.msra.mxu0 %v152
    %159 = vmatprep.subr.bf16.mxu0 0
    %160 = vmatpush1.bf16.msra.mxu0 0
    %161 = vmatprep.subr.bf16.mxu0 0
    %162 = vmatpush1.bf16.msra.mxu0 0
    %163 = vmatprep.subr.bf16.mxu0 0
    %164 = vmatpush1.bf16.msra.mxu0 0
    %165 = vmatprep.subr.bf16.mxu0 0
    %166 = vmatpush1.bf16.msra.mxu0 0
    %167 = vmatprep.subr.bf16.mxu0 0
    %168 = vmatpush1.bf16.msra.mxu0 0
    %169 = vmatprep.subr.bf16.mxu0 0
    %170 = vmatpush1.bf16.msra.mxu0 0
    %171 = vmatprep.subr.bf16.mxu0 0
    %172 = vmatpush1.bf16.msra.mxu0 0
    %173 = vmatprep.subr.bf16.mxu0 0
    %174 = vmatpush1.bf16.msra.mxu0 0
    %175 = vmatprep.subr.bf16.mxu0 0
    %176 = vmatpush1.bf16.msra.mxu0 0
    %177 = vmatprep.subr.bf16.mxu0 0
    %178 = vmatpush1.bf16.msra.mxu0 0
    %179 = vmatprep.subr.bf16.mxu0 0
    %180 = vmatpush1.bf16.msra.mxu0 0
    %181 = vmatprep.subr.bf16.mxu0 0
    %182 = vmatpush1.bf16.msra.mxu0 0
    %183 = vmatprep.subr.bf16.mxu0 0
    %184 = vmatpush1.bf16.msra.mxu0 0
    %185 = vmatprep.subr.bf16.mxu0 0
    %186 = vmatpush1.bf16.msra.mxu0 0
    %187 = vmatprep.subr.bf16.mxu0 0
    %188 = vmatpush1.bf16.msra.mxu0 0
    %189 = vmatprep.mubr.bf16.mxu0 0
    %190 = vmatmul.mubr.bf16.gmra.mrb[0].mxu0 %v148
    %v191 = vpop.f32.mrb[0].mxu0
    %v192 = vadd.f32 %v139, %v191
    %v193 = vpop.f32.mrb[0].mxu0
    %v194 = vadd.f32 %v139, %v193
    %v195 = vpop.f32.mrb[0].mxu0
    %v196 = vadd.f32 %v144, %v195
    %v197 = vpop.f32.mrb[0].mxu0
    %v198 = vadd.f32 %v144, %v197
    %199 = vdwg.mxu0
    %v200 = vadd.f32 %v74, %v75
    %201 = vadd.xlane.f32.xlu0 %v200
    %v202 = vpop.xlane.xlu0 %201
    %v203 = vadd.f32 %v76, %v77
    %204 = vadd.xlane.f32.xlu0 %v203
    %v205 = vpop.xlane.xlu0 %204
    %v206 = vmul.f32 %v202, 0.00390625
    %v207 = vmul.f32 %v205, 0.00390625
    %208 = vrot.lane.b32.xlu0 %v63, 127
    %v209 = vpop.permute.xlu0 %208
    %v212 = vsel %vm86, %v58, 0
    %214 = vmatprep.subr.mxu0 0.0
    %215 = vmatpush1.msra.mxu0 %v206
    %216 = vmatprep.subr.mxu0 0.0
    %217 = vmatpush1.msra.mxu0 %v207
    %218 = vmatprep.subr.mxu0 0.0
    %219 = vmatpush1.msra.mxu0 0.0
    %220 = vmatprep.subr.mxu0 0.0
    %221 = vmatpush1.msra.mxu0 0.0
    %222 = vmatprep.subr.mxu0 0.0
    %223 = vmatpush1.msra.mxu0 0.0
    %224 = vmatprep.subr.mxu0 0.0
    %225 = vmatpush1.msra.mxu0 0.0
    %226 = vmatprep.subr.mxu0 0.0
    %227 = vmatpush1.msra.mxu0 0.0
    %228 = vmatprep.subr.mxu0 0.0
    %229 = vmatpush1.msra.mxu0 0.0
    %230 = vmatprep.subr.mxu0 0.0
    %231 = vmatpush1.msra.mxu0 0.0
    %232 = vmatprep.subr.mxu0 0.0
    %233 = vmatpush1.msra.mxu0 0.0
    %234 = vmatprep.subr.mxu0 0.0
    %235 = vmatpush1.msra.mxu0 0.0
    %236 = vmatprep.subr.mxu0 0.0
    %237 = vmatpush1.msra.mxu0 0.0
    %238 = vmatprep.subr.mxu0 0.0
    %239 = vmatpush1.msra.mxu0 0.0
    %240 = vmatprep.subr.mxu0 0.0
    %241 = vmatpush1.msra.mxu0 0.0
    %242 = vmatprep.subr.mxu0 0.0
    %243 = vmatpush1.msra.mxu0 0.0
    %244 = vmatprep.subr.mxu0 0.0
    %245 = vmatpush1.msra.mxu0 0.0
    %246 = vmatprep.subr.mxu0 0.0
    %247 = vmatpush1.msra.mxu0 0.0
    %248 = vmatprep.subr.mxu0 0.0
    %249 = vmatpush1.msra.mxu0 0.0
    %250 = vmatprep.subr.mxu0 0.0
    %251 = vmatpush1.msra.mxu0 0.0
    %252 = vmatprep.subr.mxu0 0.0
    %253 = vmatpush1.msra.mxu0 0.0
    %254 = vmatprep.subr.mxu0 0.0
    %255 = vmatpush1.msra.mxu0 0.0
    %256 = vmatprep.subr.mxu0 0.0
    %257 = vmatpush1.msra.mxu0 0.0
    %258 = vmatprep.subr.mxu0 0.0
    %259 = vmatpush1.msra.mxu0 0.0
    %260 = vmatprep.subr.mxu0 0.0
    %261 = vmatpush1.msra.mxu0 0.0
    %262 = vmatprep.subr.mxu0 0.0
    %263 = vmatpush1.msra.mxu0 0.0
    %264 = vmatprep.subr.mxu0 0.0
    %265 = vmatpush1.msra.mxu0 0.0
    %266 = vmatprep.subr.mxu0 0.0
    %267 = vmatpush1.msra.mxu0 0.0
    %268 = vmatprep.subr.mxu0 0.0
    %269 = vmatpush1.msra.mxu0 0.0
    %270 = vmatprep.subr.mxu0 0.0
    %271 = vmatpush1.msra.mxu0 0.0
    %272 = vmatprep.subr.mxu0 0.0
    %273 = vmatpush1.msra.mxu0 0.0
    %274 = vmatprep.subr.mxu0 0.0
    %275 = vmatpush1.msra.mxu0 0.0
    %276 = vmatprep.subr.mxu0 0.0
    %277 = vmatpush1.msra.mxu0 0.0
    %278 = vmatprep.mubr.f32.mxu0 0.0
    %279 = vmatmul.mubr.f32.gmra.mrb[0].mxu0 %v212
    %v280 = vpop.f32.mrb[0].mxu0
    %v281 = vadd.f32 %v209, %v280
    %v282 = vpop.f32.mrb[0].mxu0
    %283 = vdwg.mxu0
    %v284 = vmax.f32 %v281, 0.0
    %285 = vrot.lane.b32.xlu0 %v64, 125
    %v286 = vpop.permute.xlu0 %285
    %287 = vrot.lane.b32.xlu0 %v65, 125
    %v288 = vpop.permute.xlu0 %287
    %v292 = vsel %vm146, %v61, 0
    %v295 = vsel %vm146, %v62, 0
    %vm297 = vcmask 1043456
    %v299 = vsel %vm297, %v284, 0
    %301 = vmatprep.subr.mxu0 0.0
    %302 = vmatpush1.msra.mxu0 %v299
    %303 = vmatprep.subr.mxu0 0.0
    %304 = vmatpush1.msra.mxu0 0.0
    %305 = vmatprep.subr.mxu0 0.0
    %306 = vmatpush1.msra.mxu0 0.0
    %307 = vmatprep.subr.mxu0 0.0
    %308 = vmatpush1.msra.mxu0 0.0
    %309 = vmatprep.subr.mxu0 0.0
    %310 = vmatpush1.msra.mxu0 0.0
    %311 = vmatprep.subr.mxu0 0.0
    %312 = vmatpush1.msra.mxu0 0.0
    %313 = vmatprep.subr.mxu0 0.0
    %314 = vmatpush1.msra.mxu0 0.0
    %315 = vmatprep.subr.mxu0 0.0
    %316 = vmatpush1.msra.mxu0 0.0
    %317 = vmatprep.subr.mxu0 0.0
    %318 = vmatpush1.msra.mxu0 0.0
    %319 = vmatprep.subr.mxu0 0.0
    %320 = vmatpush1.msra.mxu0 0.0
    %321 = vmatprep.subr.mxu0 0.0
    %322 = vmatpush1.msra.mxu0 0.0
    %323 = vmatprep.subr.mxu0 0.0
    %324 = vmatpush1.msra.mxu0 0.0
    %325 = vmatprep.subr.mxu0 0.0
    %326 = vmatpush1.msra.mxu0 0.0
    %327 = vmatprep.subr.mxu0 0.0
    %328 = vmatpush1.msra.mxu0 0.0
    %329 = vmatprep.subr.mxu0 0.0
    %330 = vmatpush1.msra.mxu0 0.0
    %331 = vmatprep.subr.mxu0 0.0
    %332 = vmatpush1.msra.mxu0 0.0
    %333 = vmatprep.subr.mxu0 0.0
    %334 = vmatpush1.msra.mxu0 0.0
    %335 = vmatprep.subr.mxu0 0.0
    %336 = vmatpush1.msra.mxu0 0.0
    %337 = vmatprep.subr.mxu0 0.0
    %338 = vmatpush1.msra.mxu0 0.0
    %339 = vmatprep.subr.mxu0 0.0
    %340 = vmatpush1.msra.mxu0 0.0
    %341 = vmatprep.subr.mxu0 0.0
    %342 = vmatpush1.msra.mxu0 0.0
    %343 = vmatprep.subr.mxu0 0.0
    %344 = vmatpush1.msra.mxu0 0.0
    %345 = vmatprep.subr.mxu0 0.0
    %346 = vmatpush1.msra.mxu0 0.0
    %347 = vmatprep.subr.mxu0 0.0
    %348 = vmatpush1.msra.mxu0 0.0
    %349 = vmatprep.subr.mxu0 0.0
    %350 = vmatpush1.msra.mxu0 0.0
    %351 = vmatprep.subr.mxu0 0.0
    %352 = vmatpush1.msra.mxu0 0.0
    %353 = vmatprep.subr.mxu0 0.0
    %354 = vmatpush1.msra.mxu0 0.0
    %355 = vmatprep.subr.mxu0 0.0
    %356 = vmatpush1.msra.mxu0 0.0
    %357 = vmatprep.subr.mxu0 0.0
    %358 = vmatpush1.msra.mxu0 0.0
    %359 = vmatprep.subr.mxu0 0.0
    %360 = vmatpush1.msra.mxu0 0.0
    %361 = vmatprep.subr.mxu0 0.0
    %362 = vmatpush1.msra.mxu0 0.0
    %363 = vmatprep.subr.mxu0 0.0
    %364 = vmatpush1.msra.mxu0 0.0
    %365 = vmatprep.mubr.f32.mxu0 0.0
    %366 = vmatmul.mubr.f32.gmra.mrb[0].mxu0 %v292
    %v367 = vpop.f32.mrb[0].mxu0
    %v368 = vadd.f32 %v286, %v367
    %v369 = vpop.f32.mrb[0].mxu0
    %370 = vmatprep.mubr.f32.mxu0 0.0
    %371 = vmatmul.mubr.f32.gmra.mrb[0].mxu0 %v295
    %v372 = vpop.f32.mrb[0].mxu0
    %v373 = vadd.f32 %v288, %v372
    %v374 = vpop.f32.mrb[0].mxu0
    %375 = vdwg.mxu0
    %377 = vset.pattern.permute.xlu0 0
    %378 = vperm.xlu0 %377, %v368
    %v379 = vpop.permute.xlu0 %378
    %382 = vset.pattern.permute.xlu0 0
    %383 = vperm.xlu0 %382, %v373
    %v384 = vpop.permute.xlu0 %383
    %v386 = vadd.f32 %v192, %v379
    %v387 = vadd.f32 %v194, %v379
    %v388 = vadd.f32 %v196, %v384
    %v389 = vadd.f32 %v198, %v384
    %v390 = vxor.u32 %v386, 2147483648
    %v391 = vxor.u32 %v387, 2147483648
    %v392 = vxor.u32 %v388, 2147483648
    %v393 = vxor.u32 %v389, 2147483648
    %v394 = vmul.f32 %v390, 1.442695
    %v395 = vpow.pop %v394
    %v396 = vmul.f32 %v391, 1.442695
    %v397 = vpow.pop %v396
    %v398 = vmul.f32 %v392, 1.442695
    %v399 = vpow.pop %v398
    %v400 = vmul.f32 %v393, 1.442695
    %v401 = vpow.pop %v400
    %v402 = vadd.f32 %v395, 1.0
    %v403 = vadd.f32 %v397, 1.0
    %v404 = vadd.f32 %v399, 1.0
    %v405 = vadd.f32 %v401, 1.0
    %v406 = vrcp.pop %v402
    %v407 = vmul.f32 1.0, %v406
    %v408 = vrcp.pop %v403
    %v409 = vmul.f32 1.0, %v408
    %v410 = vrcp.pop %v404
    %v411 = vmul.f32 1.0, %v410
    %v412 = vrcp.pop %v405
    %v413 = vmul.f32 1.0, %v412
    %v414 = vsub.f32 %v66, %v70
    %v415 = vsub.f32 %v67, %v71
    %v416 = vsub.f32 %v68, %v72
    %v417 = vsub.f32 %v69, %v73
    %v418 = vmul.f32 %v414, %v407
    %v419 = vmul.f32 %v415, %v409
    %v420 = vmul.f32 %v416, %v411
    %v421 = vmul.f32 %v417, %v413
    %v422 = vadd.f32 %v70, %v418
    %v423 = vadd.f32 %v71, %v419
    %v424 = vadd.f32 %v72, %v420
    %v425 = vadd.f32 %v73, %v421
    %426 = vst [vmem:[#allocation8] sm:$0xff] %v422
    %427 = vst [vmem:[#allocation8 + $0x8] sm:$0xff] %v423
    %428 = vst [vmem:[#allocation8 + $0x10] sm:$0xff] %v424
    %429 = vst [vmem:[#allocation8 + $0x18] sm:$0xff] %v425
    %s430 = scalar_lea.vmem [#allocation2], 32
    %v431 = vld [vmem:[%s430] sm:$0xff]
    %v432 = vld [vmem:[%s430 + $0x8] sm:$0xff]
    %v433 = vld [vmem:[%s430 + $0x10] sm:$0xff]
    %v434 = vld [vmem:[%s430 + $0x18] sm:$0xff]
    %s435 = scalar_lea.vmem [#allocation5], 32
    %v436 = vld [vmem:[%s435] sm:$0xff]
    %v437 = vld [vmem:[%s435 + $0x8] sm:$0xff]
    %v438 = vld [vmem:[%s435 + $0x10] sm:$0xff]
    %v439 = vld [vmem:[%s435 + $0x18] sm:$0xff]
    %v440 = vadd.f32 %v431, %v436
    %v441 = vadd.f32 %v432, %v437
    %v442 = vadd.f32 %v433, %v438
    %v443 = vadd.f32 %v434, %v439
    %v444 = vpack.c.bf16 %v442, %v440
    %v445 = vpack.c.bf16 %v443, %v441
    %446 = vmatprep.subr.bf16.mxu0 %v445
    %447 = vmatpush1.bf16.msra.mxu0 %v444
    %448 = vmatprep.subr.bf16.mxu0 0
    %449 = vmatpush1.bf16.msra.mxu0 0
    %450 = vmatprep.subr.bf16.mxu0 0
    %451 = vmatpush1.bf16.msra.mxu0 0
    %452 = vmatprep.subr.bf16.mxu0 0
    %453 = vmatpush1.bf16.msra.mxu0 0
    %454 = vmatprep.subr.bf16.mxu0 0
    %455 = vmatpush1.bf16.msra.mxu0 0
    %456 = vmatprep.subr.bf16.mxu0 0
    %457 = vmatpush1.bf16.msra.mxu0 0
    %458 = vmatprep.subr.bf16.mxu0 0
    %459 = vmatpush1.bf16.msra.mxu0 0
    %460 = vmatprep.subr.bf16.mxu0 0
    %461 = vmatpush1.bf16.msra.mxu0 0
    %462 = vmatprep.subr.bf16.mxu0 0
    %463 = vmatpush1.bf16.msra.mxu0 0
    %464 = vmatprep.subr.bf16.mxu0 0
    %465 = vmatpush1.bf16.msra.mxu0 0
    %466 = vmatprep.subr.bf16.mxu0 0
    %467 = vmatpush1.bf16.msra.mxu0 0
    %468 = vmatprep.subr.bf16.mxu0 0
    %469 = vmatpush1.bf16.msra.mxu0 0
    %470 = vmatprep.subr.bf16.mxu0 0
    %471 = vmatpush1.bf16.msra.mxu0 0
    %472 = vmatprep.subr.bf16.mxu0 0
    %473 = vmatpush1.bf16.msra.mxu0 0
    %474 = vmatprep.subr.bf16.mxu0 0
    %475 = vmatpush1.bf16.msra.mxu0 0
    %476 = vmatprep.subr.bf16.mxu0 0
    %477 = vmatpush1.bf16.msra.mxu0 0
    %478 = vmatprep.mubr.bf16.mxu0 0
    %479 = vmatmul.mubr.bf16.gmra.mrb[0].mxu0 %v88
    %v480 = vpop.f32.mrb[0].mxu0
    %v481 = vadd.f32 %v84, %v480
    %v482 = vpop.f32.mrb[0].mxu0
    %v483 = vadd.f32 %v84, %v482
    %v484 = vpop.f32.mrb[0].mxu0
    %v485 = vpop.f32.mrb[0].mxu0
    %486 = vdwg.mxu0
    %v487 = vmax.f32 %v481, 0.0
    %v488 = vmax.f32 %v483, 0.0
    %v489 = vpack.c.bf16 %v487, %v487
    %v490 = vpack.c.bf16 %v488, %v488
    %v492 = vsel %vm150, %v489, 0
    %v495 = vsel %vm150, %v490, 0
    %497 = vmatprep.subr.bf16.mxu0 %v495
    %498 = vmatpush1.bf16.msra.mxu0 %v492
    %499 = vmatprep.subr.bf16.mxu0 0
    %500 = vmatpush1.bf16.msra.mxu0 0
    %501 = vmatprep.subr.bf16.mxu0 0
    %502 = vmatpush1.bf16.msra.mxu0 0
    %503 = vmatprep.subr.bf16.mxu0 0
    %504 = vmatpush1.bf16.msra.mxu0 0
    %505 = vmatprep.subr.bf16.mxu0 0
    %506 = vmatpush1.bf16.msra.mxu0 0
    %507 = vmatprep.subr.bf16.mxu0 0
    %508 = vmatpush1.bf16.msra.mxu0 0
    %509 = vmatprep.subr.bf16.mxu0 0
    %510 = vmatpush1.bf16.msra.mxu0 0
    %511 = vmatprep.subr.bf16.mxu0 0
    %512 = vmatpush1.bf16.msra.mxu0 0
    %513 = vmatprep.subr.bf16.mxu0 0
    %514 = vmatpush1.bf16.msra.mxu0 0
    %515 = vmatprep.subr.bf16.mxu0 0
    %516 = vmatpush1.bf16.msra.mxu0 0
    %517 = vmatprep.subr.bf16.mxu0 0
    %518 = vmatpush1.bf16.msra.mxu0 0
    %519 = vmatprep.subr.bf16.mxu0 0
    %520 = vmatpush1.bf16.msra.mxu0 0
    %521 = vmatprep.subr.bf16.mxu0 0
    %522 = vmatpush1.bf16.msra.mxu0 0
    %523 = vmatprep.subr.bf16.mxu0 0
    %524 = vmatpush1.bf16.msra.mxu0 0
    %525 = vmatprep.subr.bf16.mxu0 0
    %526 = vmatpush1.bf16.msra.mxu0 0
    %527 = vmatprep.subr.bf16.mxu0 0
    %528 = vmatpush1.bf16.msra.mxu0 0
    %529 = vmatprep.mubr.bf16.mxu0 0
    %530 = vmatmul.mubr.bf16.gmra.mrb[0].mxu0 %v148
    %v531 = vpop.f32.mrb[0].mxu0
    %v532 = vadd.f32 %v139, %v531
    %v533 = vpop.f32.mrb[0].mxu0
    %v534 = vadd.f32 %v139, %v533
    %v535 = vpop.f32.mrb[0].mxu0
    %v536 = vadd.f32 %v144, %v535
    %v537 = vpop.f32.mrb[0].mxu0
    %v538 = vadd.f32 %v144, %v537
    %539 = vdwg.mxu0
    %v540 = vadd.f32 %v440, %v441
    %541 = vadd.xlane.f32.xlu0 %v540
    %v542 = vpop.xlane.xlu0 %541
    %v543 = vadd.f32 %v442, %v443
    %544 = vadd.xlane.f32.xlu0 %v543
    %v545 = vpop.xlane.xlu0 %544
    %v546 = vmul.f32 %v542, 0.00390625
    %v547 = vmul.f32 %v545, 0.00390625
    %548 = vmatprep.subr.mxu0 0.0
    %549 = vmatpush1.msra.mxu0 %v546
    %550 = vmatprep.subr.mxu0 0.0
    %551 = vmatpush1.msra.mxu0 %v547
    %552 = vmatprep.subr.mxu0 0.0
    %553 = vmatpush1.msra.mxu0 0.0
    %554 = vmatprep.subr.mxu0 0.0
    %555 = vmatpush1.msra.mxu0 0.0
    %556 = vmatprep.subr.mxu0 0.0
    %557 = vmatpush1.msra.mxu0 0.0
    %558 = vmatprep.subr.mxu0 0.0
    %559 = vmatpush1.msra.mxu0 0.0
    %560 = vmatprep.subr.mxu0 0.0
    %561 = vmatpush1.msra.mxu0 0.0
    %562 = vmatprep.subr.mxu0 0.0
    %563 = vmatpush1.msra.mxu0 0.0
    %564 = vmatprep.subr.mxu0 0.0
    %565 = vmatpush1.msra.mxu0 0.0
    %566 = vmatprep.subr.mxu0 0.0
    %567 = vmatpush1.msra.mxu0 0.0
    %568 = vmatprep.subr.mxu0 0.0
    %569 = vmatpush1.msra.mxu0 0.0
    %570 = vmatprep.subr.mxu0 0.0
    %571 = vmatpush1.msra.mxu0 0.0
    %572 = vmatprep.subr.mxu0 0.0
    %573 = vmatpush1.msra.mxu0 0.0
    %574 = vmatprep.subr.mxu0 0.0
    %575 = vmatpush1.msra.mxu0 0.0
    %576 = vmatprep.subr.mxu0 0.0
    %577 = vmatpush1.msra.mxu0 0.0
    %578 = vmatprep.subr.mxu0 0.0
    %579 = vmatpush1.msra.mxu0 0.0
    %580 = vmatprep.subr.mxu0 0.0
    %581 = vmatpush1.msra.mxu0 0.0
    %582 = vmatprep.subr.mxu0 0.0
    %583 = vmatpush1.msra.mxu0 0.0
    %584 = vmatprep.subr.mxu0 0.0
    %585 = vmatpush1.msra.mxu0 0.0
    %586 = vmatprep.subr.mxu0 0.0
    %587 = vmatpush1.msra.mxu0 0.0
    %588 = vmatprep.subr.mxu0 0.0
    %589 = vmatpush1.msra.mxu0 0.0
    %590 = vmatprep.subr.mxu0 0.0
    %591 = vmatpush1.msra.mxu0 0.0
    %592 = vmatprep.subr.mxu0 0.0
    %593 = vmatpush1.msra.mxu0 0.0
    %594 = vmatprep.subr.mxu0 0.0
    %595 = vmatpush1.msra.mxu0 0.0
    %596 = vmatprep.subr.mxu0 0.0
    %597 = vmatpush1.msra.mxu0 0.0
    %598 = vmatprep.subr.mxu0 0.0
    %599 = vmatpush1.msra.mxu0 0.0
    %600 = vmatprep.subr.mxu0 0.0
    %601 = vmatpush1.msra.mxu0 0.0
    %602 = vmatprep.subr.mxu0 0.0
    %603 = vmatpush1.msra.mxu0 0.0
    %604 = vmatprep.subr.mxu0 0.0
    %605 = vmatpush1.msra.mxu0 0.0
    %606 = vmatprep.subr.mxu0 0.0
    %607 = vmatpush1.msra.mxu0 0.0
    %608 = vmatprep.subr.mxu0 0.0
    %609 = vmatpush1.msra.mxu0 0.0
    %610 = vmatprep.subr.mxu0 0.0
    %611 = vmatpush1.msra.mxu0 0.0
    %612 = vmatprep.mubr.f32.mxu0 0.0
    %613 = vmatmul.mubr.f32.gmra.mrb[0].mxu0 %v212
    %v614 = vpop.f32.mrb[0].mxu0
    %v615 = vadd.f32 %v209, %v614
    %v616 = vpop.f32.mrb[0].mxu0
    %617 = vdwg.mxu0
    %v618 = vmax.f32 %v615, 0.0
    %v620 = vsel %vm297, %v618, 0
    %622 = vmatprep.subr.mxu0 0.0
    %623 = vmatpush1.msra.mxu0 %v620
    %624 = vmatprep.subr.mxu0 0.0
    %625 = vmatpush1.msra.mxu0 0.0
    %626 = vmatprep.subr.mxu0 0.0
    %627 = vmatpush1.msra.mxu0 0.0
    %628 = vmatprep.subr.mxu0 0.0
    %629 = vmatpush1.msra.mxu0 0.0
    %630 = vmatprep.subr.mxu0 0.0
    %631 = vmatpush1.msra.mxu0 0.0
    %632 = vmatprep.subr.mxu0 0.0
    %633 = vmatpush1.msra.mxu0 0.0
    %634 = vmatprep.subr.mxu0 0.0
    %635 = vmatpush1.msra.mxu0 0.0
    %636 = vmatprep.subr.mxu0 0.0
    %637 = vmatpush1.msra.mxu0 0.0
    %638 = vmatprep.subr.mxu0 0.0
    %639 = vmatpush1.msra.mxu0 0.0
    %640 = vmatprep.subr.mxu0 0.0
    %641 = vmatpush1.msra.mxu0 0.0
    %642 = vmatprep.subr.mxu0 0.0
    %643 = vmatpush1.msra.mxu0 0.0
    %644 = vmatprep.subr.mxu0 0.0
    %645 = vmatpush1.msra.mxu0 0.0
    %646 = vmatprep.subr.mxu0 0.0
    %647 = vmatpush1.msra.mxu0 0.0
    %648 = vmatprep.subr.mxu0 0.0
    %649 = vmatpush1.msra.mxu0 0.0
    %650 = vmatprep.subr.mxu0 0.0
    %651 = vmatpush1.msra.mxu0 0.0
    %652 = vmatprep.subr.mxu0 0.0
    %653 = vmatpush1.msra.mxu0 0.0
    %654 = vmatprep.subr.mxu0 0.0
    %655 = vmatpush1.msra.mxu0 0.0
    %656 = vmatprep.subr.mxu0 0.0
    %657 = vmatpush1.msra.mxu0 0.0
    %658 = vmatprep.subr.mxu0 0.0
    %659 = vmatpush1.msra.mxu0 0.0
    %660 = vmatprep.subr.mxu0 0.0
    %661 = vmatpush1.msra.mxu0 0.0
    %662 = vmatprep.subr.mxu0 0.0
    %663 = vmatpush1.msra.mxu0 0.0
    %664 = vmatprep.subr.mxu0 0.0
    %665 = vmatpush1.msra.mxu0 0.0
    %666 = vmatprep.subr.mxu0 0.0
    %667 = vmatpush1.msra.mxu0 0.0
    %668 = vmatprep.subr.mxu0 0.0
    %669 = vmatpush1.msra.mxu0 0.0
    %670 = vmatprep.subr.mxu0 0.0
    %671 = vmatpush1.msra.mxu0 0.0
    %672 = vmatprep.subr.mxu0 0.0
    %673 = vmatpush1.msra.mxu0 0.0
    %674 = vmatprep.subr.mxu0 0.0
    %675 = vmatpush1.msra.mxu0 0.0
    %676 = vmatprep.subr.mxu0 0.0
    %677 = vmatpush1.msra.mxu0 0.0
    %678 = vmatprep.subr.mxu0 0.0
    %679 = vmatpush1.msra.mxu0 0.0
    %680 = vmatprep.subr.mxu0 0.0
    %681 = vmatpush1.msra.mxu0 0.0
    %682 = vmatprep.subr.mxu0 0.0
    %683 = vmatpush1.msra.mxu0 0.0
    %684 = vmatprep.subr.mxu0 0.0
    %685 = vmatpush1.msra.mxu0 0.0
    %686 = vmatprep.mubr.f32.mxu0 0.0
    %687 = vmatmul.mubr.f32.gmra.mrb[0].mxu0 %v292
    %v688 = vpop.f32.mrb[0].mxu0
    %v689 = vadd.f32 %v286, %v688
    %v690 = vpop.f32.mrb[0].mxu0
    %691 = vmatprep.mubr.f32.mxu0 0.0
    %692 = vmatmul.mubr.f32.gmra.mrb[0].mxu0 %v295
    %v693 = vpop.f32.mrb[0].mxu0
    %v694 = vadd.f32 %v288, %v693
    %v695 = vpop.f32.mrb[0].mxu0
    %696 = vdwg.mxu0
    %698 = vset.pattern.permute.xlu0 0
    %699 = vperm.xlu0 %698, %v689
    %v700 = vpop.permute.xlu0 %699
    %703 = vset.pattern.permute.xlu0 0
    %704 = vperm.xlu0 %703, %v694
    %v705 = vpop.permute.xlu0 %704
    %v707 = vadd.f32 %v532, %v700
    %v708 = vadd.f32 %v534, %v700
    %v709 = vadd.f32 %v536, %v705
    %v710 = vadd.f32 %v538, %v705
    %v711 = vxor.u32 %v707, 2147483648
    %v712 = vxor.u32 %v708, 2147483648
    %v713 = vxor.u32 %v709, 2147483648
    %v714 = vxor.u32 %v710, 2147483648
    %v715 = vmul.f32 %v711, 1.442695
    %v716 = vpow.pop %v715
    %v717 = vmul.f32 %v712, 1.442695
    %v718 = vpow.pop %v717
    %v719 = vmul.f32 %v713, 1.442695
    %v720 = vpow.pop %v719
    %v721 = vmul.f32 %v714, 1.442695
    %v722 = vpow.pop %v721
    %v723 = vadd.f32 %v716, 1.0
    %v724 = vadd.f32 %v718, 1.0
    %v725 = vadd.f32 %v720, 1.0
    %v726 = vadd.f32 %v722, 1.0
    %v727 = vrcp.pop %v723
    %v728 = vmul.f32 1.0, %v727
    %v729 = vrcp.pop %v724
    %v730 = vmul.f32 1.0, %v729
    %v731 = vrcp.pop %v725
    %v732 = vmul.f32 1.0, %v731
    %v733 = vrcp.pop %v726
    %v734 = vmul.f32 1.0, %v733
    %v735 = vsub.f32 %v431, %v436
    %v736 = vsub.f32 %v432, %v437
    %v737 = vsub.f32 %v433, %v438
    %v738 = vsub.f32 %v434, %v439
    %v739 = vmul.f32 %v735, %v728
    %v740 = vmul.f32 %v736, %v730
    %v741 = vmul.f32 %v737, %v732
    %v742 = vmul.f32 %v738, %v734
    %v743 = vadd.f32 %v436, %v739
    %v744 = vadd.f32 %v437, %v740
    %v745 = vadd.f32 %v438, %v741
    %v746 = vadd.f32 %v439, %v742
    %s747 = scalar_lea.vmem [#allocation8], 32
    %748 = vst [vmem:[%s747] sm:$0xff] %v743
    %749 = vst [vmem:[%s747 + $0x8] sm:$0xff] %v744
    %750 = vst [vmem:[%s747 + $0x10] sm:$0xff] %v745
    %751 = vst [vmem:[%s747 + $0x18] sm:$0xff] %v746
    // Predicated region
    $region26: #{tpu_custom_call.1} parent=1 // pred_check
      _
    $region27: #{tpu_custom_call.1} parent=1 // pred_check_branch
      %753 = sbr.rel (0) target = $region29
    $region28: #{tpu_custom_call.1} parent=1 // pred_region
      %s755 = ssub.s32 1024, 1024
      %756 = vsyncadd [#allocation4], %s755
      %s757 = sshll.u32 [#allocation8], 4
      %s758 = int_to_ptr.vmem [resolvable:$true] %s757
      %763 = dma.vmem_to_hbm [thread:$0]  %s758, 1024, %s3, [#allocation4], 256, 256, 16
    $region29: #{tpu_custom_call.1} parent=1 // pred_fallthru
      _
    // Predicated region
    $region30: #{tpu_custom_call.1} parent=1 // pred_check
      _
    $region31: #{tpu_custom_call.1} parent=1 // pred_check_branch
      %765 = sbr.rel (0) target = $region33
    $region32: #{tpu_custom_call.1} parent=1 // pred_region
      %766 = dma.done [#allocation4], 1024
    $region33: #{tpu_custom_call.1} parent=1 // pred_fallthru
      _
    %767 = vsyncpa [#allocation3], 1
    %768 = vsyncpa [#allocation6], 1
    %769 = vsyncpa [#allocation4], 1

</llo_original>
